<compile_context>
chip_gen: v7x
topology: tpu7x:2x2x1
jax: 0.10.0
libtpu: 0.0.40
codegen_flags: <defaults>
</compile_context>

<pallas_src>
import functools

import jax
import jax.numpy as jnp
from jax.experimental import pallas as pl
from jax.experimental.pallas import tpu as pltpu

_LANE = 128


def _inter_feature_kernel(x_ref, w1t_ref, w2t_ref, o_ref, sum_acc, max_acc,
                          *, hw, mask_tail, c_strip):
    # x_ref   : (C, THW)  spatial tile of one batch element's flattened input
    # w1t_ref : (C, hid)  first 1x1 conv weight, pre-transposed
    # w2t_ref : (hid, C)  second 1x1 conv weight, pre-transposed
    # o_ref   : (1, C)    lane-dense per-batch output row
    # sum_acc : (C, 128)  f32 running-sum accumulator
    # max_acc : (C, 128)  f32 running-max accumulator
    j = pl.program_id(1)
    nj = pl.num_programs(1)
    c, thw = x_ref.shape
    nfull = thw // _LANE      # full 128-lane chunks per tile
    rem = thw % _LANE         # nonzero only in the single-tile configuration
    n_strips = (c + c_strip - 1) // c_strip

    @pl.when(j == 0)
    def _():
        sum_acc[...] = jnp.zeros_like(sum_acc)
        max_acc[...] = jnp.full_like(max_acc, -jnp.inf)

    def accumulate(masked):
        base = j * thw
        for si in range(n_strips):
            r0 = si * c_strip
            rows = min(c_strip, c - r0)
            rs = slice(r0, r0 + rows)

            if nfull > 0:
                def chunk_body(k, carry):
                    s, m = carry
                    start = pl.multiple_of(k * _LANE, _LANE)
                    # Fused slice + widen: only a (rows, 128) chunk lives at a time.
                    chunk = x_ref[rs, pl.ds(start, _LANE)].astype(jnp.float32)
                    if masked:
                        valid = hw - base - start
                        lane_idx = jax.lax.broadcasted_iota(
                            jnp.int32, (1, _LANE), 1)
                        keep = lane_idx < valid
                        s = s + jnp.where(keep, chunk, 0.0)
                        m = jnp.maximum(m, jnp.where(keep, chunk, -jnp.inf))
                    else:
                        s = s + chunk
                        m = jnp.maximum(m, chunk)
                    return s, m

                s, m = jax.lax.fori_loop(
                    0, nfull, chunk_body,
                    (sum_acc[rs, :], max_acc[rs, :]),
                    unroll=min(nfull, 8))
                sum_acc[rs, :] = s
                max_acc[rs, :] = m

            if rem:
                # Static sub-128 remainder (single-tile config only; never
                # combined with the dynamic last-tile mask).
                tail = x_ref[rs, nfull * _LANE:thw].astype(jnp.float32)
                sum_acc[rs, :rem] = sum_acc[rs, :rem] + tail
                max_acc[rs, :rem] = jnp.maximum(max_acc[rs, :rem], tail)

    if mask_tail:
        # Only the last spatial tile pays the mask (iota + compare + selects).
        @pl.when(j < nj - 1)
        def _():
            accumulate(masked=False)

        @pl.when(j == nj - 1)
        def _():
            accumulate(masked=True)
    else:
        accumulate(masked=False)

    @pl.when(j == nj - 1)
    def _():
        inv_hw = 1.0 / hw
        avg_col = jnp.sum(sum_acc[...], axis=-1, keepdims=True) * inv_hw  # (C, 1)
        max_col = jnp.max(max_acc[...], axis=-1, keepdims=True)           # (C, 1)
        pooled = jnp.concatenate([avg_col, max_col], axis=1).T            # (2, C)

        w1t = w1t_ref[...].astype(jnp.float32)                            # (C, hid)
        w2t = w2t_ref[...].astype(jnp.float32)                            # (hid, C)
        h = jnp.maximum(
            jnp.dot(pooled, w1t, preferred_element_type=jnp.float32), 0.0)  # (2, hid)
        y2 = jnp.dot(h, w2t, preferred_element_type=jnp.float32)            # (2, C)
        y = jax.nn.sigmoid(y2[0:1, :] + y2[1:2, :])                          # (1, C)
        o_ref[...] = y.reshape(o_ref.shape).astype(o_ref.dtype)


def _pick_thw(hw, c, itemsize, target_bytes):
    """Lane-aligned spatial tile width targeting ~target_bytes per x buffer."""
    lanes = (target_bytes // max(1, c * itemsize)) // _LANE * _LANE
    lanes = max(lanes, _LANE)
    if hw <= lanes:
        return hw          # one tile covers the whole spatial extent
    return lanes           # multiple of 128; a partial tail tile gets masked


def inter_feature(x, w1, w2, *, thw=None, target_bytes=4 << 20, x_buffers=2,
                  interpret=False):
    """x: (N, C, H, W); w1: (C//r, C); w2: (C, C//r) -> (N, C, 1, 1)."""
    N, C, H, W = x.shape
    hw = H * W
    hid = w1.shape[0]
    x_flat = x.reshape(N, C, hw)

    if thw is None:
        thw = _pick_thw(hw, C, x.dtype.itemsize, target_bytes)
    assert thw == hw or thw % _LANE == 0, "spatial tile must be lane-aligned"
    nj = pl.cdiv(hw, thw)
    mask_tail = (hw % thw) != 0
    c_strip = min(C, 64)

    kernel = functools.partial(_inter_feature_kernel, hw=hw,
                               mask_tail=mask_tail, c_strip=c_strip)

    w_itemsize = jnp.dtype(w1.dtype).itemsize
    # VMEM budget: double-buffered x tiles + weights + output + accumulators,
    # plus headroom. v5e's scoped default is only 16 MiB, so set explicitly.
    need = (2 * C * thw * x.dtype.itemsize          # x tiles (double-buffered)
            + 4 * C * hid * w_itemsize              # both weights, 2 buffers
            + 2 * C * x.dtype.itemsize              # output row
            + 2 * C * _LANE * 4)                    # f32 accumulators
    vmem_limit = int(min(max(need + (8 << 20), 32 << 20), 64 << 20))

    cost = pl.CostEstimate(
        flops=2 * N * C * hw + 8 * N * C * hid,
        transcendentals=N * C,
        bytes_accessed=(N * C * hw * x.dtype.itemsize
                        + 2 * C * hid * w_itemsize
                        + N * C * x.dtype.itemsize),
    )

    x_spec_kwargs = {}
    if x_buffers != 2:
        # Optional deeper buffering to hide the per-batch epilogue (sweepable).
        x_spec_kwargs["pipeline_mode"] = pl.Buffered(x_buffers)
    x_spec = pl.BlockSpec((None, C, thw), lambda n, j: (n, 0, j),
                          **x_spec_kwargs)

    out = pl.pallas_call(
        kernel,
        out_shape=jax.ShapeDtypeStruct((N, 1, C), x.dtype),
        grid_spec=pltpu.PrefetchScalarGridSpec(
            num_scalar_prefetch=0,
            grid=(N, nj),
            in_specs=[
                x_spec,
                pl.BlockSpec((C, hid), lambda n, j: (0, 0)),
                pl.BlockSpec((hid, C), lambda n, j: (0, 0)),
            ],
            out_specs=pl.BlockSpec((None, 1, C), lambda n, j: (n, 0, 0)),
            scratch_shapes=[
                pltpu.VMEM((C, _LANE), jnp.float32),   # running sum
                pltpu.VMEM((C, _LANE), jnp.float32),   # running max
            ],
        ),
        compiler_params=pltpu.CompilerParams(
            dimension_semantics=("parallel", "arbitrary"),
            vmem_limit_bytes=vmem_limit),
        cost_estimate=cost,
        interpret=interpret,
    )(x_flat, jnp.transpose(w1), jnp.transpose(w2))

    return out.reshape(N, C, 1, 1)


def inter_feature_ref(x, w1, w2):
    # Pure-JAX reference mirroring the PyTorch forward.
    avg = jnp.mean(x, axis=(2, 3))                    # (N, C)
    mx = jnp.max(x, axis=(2, 3))                      # (N, C)

    def mlp(v):                                       # v: (N, C)
        h = jnp.maximum(v @ w1.T, 0.0)                # (N, C//r)
        return h @ w2.T                               # (N, C)

    out = jax.nn.sigmoid(mlp(avg) + mlp(mx))          # (N, C)
    return out[:, :, None, None]                      # (N, C, 1, 1)


if __name__ == "__main__":
    N, C, H, W = 2, 32, 16, 16
    ratio = 16
    hid = C // ratio

    key = jax.random.PRNGKey(0)
    kx, kw1, kw2 = jax.random.split(key, 3)

    x = jax.random.normal(kx, (N, C, H, W), dtype=jnp.float32)
    # Deterministic synthetic weights for the two 1x1 convs (no bias).
    w1 = jax.random.normal(kw1, (hid, C), dtype=jnp.float32) * 0.1
    w2 = jax.random.normal(kw2, (C, hid), dtype=jnp.float32) * 0.1

    ref = inter_feature_ref(x, w1, w2)

    # 1) Multi-tile streaming path (hw=256, thw=128 -> 2 tiles/batch, no mask).
    out = jax.block_until_ready(inter_feature(x, w1, w2, thw=128))
    assert out.shape == (N, C, 1, 1)
    assert jnp.allclose(out, ref, atol=1e-5, rtol=1e-5)

    # 2) Masked-tail path (hw=255, thw=128 -> 2 tiles, partial last tile).
    x2 = jax.random.normal(kx, (N, C, 17, 15), dtype=jnp.float32)
    out2 = jax.block_until_ready(inter_feature(x2, w1, w2, thw=128))
    assert jnp.allclose(out2, inter_feature_ref(x2, w1, w2), atol=1e-5, rtol=1e-5)

    # 3) Default auto-picked tile (single full-width tile; 2 in-tile chunks).
    out3 = jax.block_until_ready(inter_feature(x, w1, w2))
    assert jnp.allclose(out3, ref, atol=1e-5, rtol=1e-5)

    # 4) Channel strips + sub-128 remainder path (C=96 -> 2 strips, hw=81).
    C4, hid4 = 96, 96 // ratio
    kx4, kw14, kw24 = jax.random.split(jax.random.PRNGKey(0), 3)
    x4 = jax.random.normal(kx4, (1, C4, 9, 9), dtype=jnp.float32)
    w14 = jax.random.normal(kw14, (hid4, C4), dtype=jnp.float32) * 0.1
    w24 = jax.random.normal(kw24, (C4, hid4), dtype=jnp.float32) * 0.1
    out4 = jax.block_until_ready(inter_feature(x4, w14, w24))
    assert jnp.allclose(out4, inter_feature_ref(x4, w14, w24),
                        atol=1e-5, rtol=1e-5)

    print("KERNEL_OK")
</pallas_src>

<mosaic_0001>
module attributes {stable_mosaic.version = 11 : i64} {
  func.func @_inter_feature_kernel(%arg0: i32, %arg1: i32, %arg2: memref<1x32x128xf32, #tpu.memory_space<vmem>>, %arg3: memref<32x2xf32, #tpu.memory_space<vmem>>, %arg4: memref<2x32xf32, #tpu.memory_space<vmem>>, %arg5: memref<1x1x32xf32, #tpu.memory_space<vmem>>, %arg6: memref<32x128xf32, #tpu.memory_space<vmem>>, %arg7: memref<32x128xf32, #tpu.memory_space<vmem>>) attributes {dimension_semantics = [#tpu.dimension_semantics<parallel>, #tpu.dimension_semantics<arbitrary>], iteration_bounds = array<i64: 2, 2>, scalar_prefetch = 0 : i64, scratch_operands = 2 : i64, tpu.core_type = #tpu.core_type<tc>, window_params = [{transform_indices = @transform_0, window_bounds = array<i64: 1, 32, 128>}, {pipeline_mode = #tpu.pipeline_mode<synchronous>, transform_indices = @transform_1, window_bounds = array<i64: 32, 2>}, {pipeline_mode = #tpu.pipeline_mode<synchronous>, transform_indices = @transform_2, window_bounds = array<i64: 2, 32>}, {transform_indices = @transform_3, window_bounds = array<i64: 1, 1, 32>}]} {
    %c0_i32 = arith.constant 0 : i32
    %0 = arith.cmpi eq, %arg1, %c0_i32 : i32
    %1 = arith.extui %0 : i1 to i32
    %c0_i32_0 = arith.constant 0 : i32
    %2 = arith.cmpi ne, %1, %c0_i32_0 : i32
    scf.if %2 {
      %cst = arith.constant 0.000000e+00 : f32
      %17 = vector.broadcast %cst : f32 to vector<32x128xf32>
      %c0_13 = arith.constant 0 : index
      %c0_14 = arith.constant 0 : index
      %18 = vector.load %arg6[%c0_13, %c0_14] : memref<32x128xf32, #tpu.memory_space<vmem>>, vector<32x128xf32>
      tpu.vector_store %arg6[%c0_13, %c0_14], %17 {strides = array<i32>} : memref<32x128xf32, #tpu.memory_space<vmem>>, vector<32x128xf32>,
      %cst_15 = arith.constant 0xFF800000 : f32
      %19 = vector.broadcast %cst_15 : f32 to vector<32x128xf32>
      %c0_16 = arith.constant 0 : index
      %c0_17 = arith.constant 0 : index
      %20 = vector.load %arg7[%c0_16, %c0_17] : memref<32x128xf32, #tpu.memory_space<vmem>>, vector<32x128xf32>
      tpu.vector_store %arg7[%c0_16, %c0_17], %19 {strides = array<i32>} : memref<32x128xf32, #tpu.memory_space<vmem>>, vector<32x128xf32>,
    } else {
    }
    %c0 = arith.constant 0 : index
    %c0_1 = arith.constant 0 : index
    %3 = vector.load %arg6[%c0, %c0_1] : memref<32x128xf32, #tpu.memory_space<vmem>>, vector<32x128xf32>
    %c0_2 = arith.constant 0 : index
    %c0_3 = arith.constant 0 : index
    %4 = vector.load %arg7[%c0_2, %c0_3] : memref<32x128xf32, #tpu.memory_space<vmem>>, vector<32x128xf32>
    %c0_i32_4 = arith.constant 0 : i32
    %c128_i32 = arith.constant 128 : i32
    %5 = arith.muli %c0_i32_4, %c128_i32 : i32
    %6 = tpu.assume_multiple %5, 128 : i32
    %c0_5 = arith.constant 0 : index
    %c0_6 = arith.constant 0 : index
    %7 = arith.index_cast %6 : i32 to index
    %8 = vector.load %arg2[%c0_5, %c0_6, %7] : memref<1x32x128xf32, #tpu.memory_space<vmem>>, vector<1x32x128xf32>
    %9 = vector.shape_cast %8 : vector<1x32x128xf32> to vector<32x128xf32>
    %10 = arith.addf %3, %9 : vector<32x128xf32>
    %11 = arith.maximumf %4, %9 : vector<32x128xf32>
    %c1_i32 = arith.constant 1 : i32
    %c0_7 = arith.constant 0 : index
    %c0_8 = arith.constant 0 : index
    %12 = vector.load %arg6[%c0_7, %c0_8] : memref<32x128xf32, #tpu.memory_space<vmem>>, vector<32x128xf32>
    tpu.vector_store %arg6[%c0_7, %c0_8], %10 {strides = array<i32>} : memref<32x128xf32, #tpu.memory_space<vmem>>, vector<32x128xf32>,
    %c0_9 = arith.constant 0 : index
    %c0_10 = arith.constant 0 : index
    %13 = vector.load %arg7[%c0_9, %c0_10] : memref<32x128xf32, #tpu.memory_space<vmem>>, vector<32x128xf32>
    tpu.vector_store %arg7[%c0_9, %c0_10], %11 {strides = array<i32>} : memref<32x128xf32, #tpu.memory_space<vmem>>, vector<32x128xf32>,
    %c1_i32_11 = arith.constant 1 : i32
    %14 = arith.cmpi eq, %arg1, %c1_i32_11 : i32
    %15 = arith.extui %14 : i1 to i32
    %c0_i32_12 = arith.constant 0 : i32
    %16 = arith.cmpi ne, %15, %c0_i32_12 : i32
    scf.if %16 {
      %c0_13 = arith.constant 0 : index
      %c0_14 = arith.constant 0 : index
      %17 = vector.load %arg6[%c0_13, %c0_14] : memref<32x128xf32, #tpu.memory_space<vmem>>, vector<32x128xf32>
      %cst = arith.constant dense<0.000000e+00> : vector<32xf32>
      %18 = vector.multi_reduction <add>, %17, %cst [1] : vector<32x128xf32> to vector<32xf32>
      %19 = vector.shape_cast %18 : vector<32xf32> to vector<32x1xf32>
      %cst_15 = arith.constant 3.906250e-03 : f32
      %20 = vector.broadcast %cst_15 : f32 to vector<32x1xf32>
      %21 = arith.mulf %19, %20 : vector<32x1xf32>
      %c0_16 = arith.constant 0 : index
      %c0_17 = arith.constant 0 : index
      %22 = vector.load %arg7[%c0_16, %c0_17] : memref<32x128xf32, #tpu.memory_space<vmem>>, vector<32x128xf32>
      %cst_18 = arith.constant dense<0xFF800000> : vector<32xf32>
      %23 = vector.multi_reduction <maximumf>, %22, %cst_18 [1] : vector<32x128xf32> to vector<32xf32>
      %24 = vector.shape_cast %23 : vector<32xf32> to vector<32x1xf32>
      %25 = tpu.concatenate %21, %24 in 1 : vector<32x1xf32>, vector<32x1xf32> -> vector<32x2xf32>
      %26 = tpu.transpose %25, [1, 0] : vector<32x2xf32> -> vector<2x32xf32>
      %c0_19 = arith.constant 0 : index
      %c0_20 = arith.constant 0 : index
      %27 = vector.load %arg3[%c0_19, %c0_20] : memref<32x2xf32, #tpu.memory_space<vmem>>, vector<32x2xf32>
      %c0_21 = arith.constant 0 : index
      %c0_22 = arith.constant 0 : index
      %28 = vector.load %arg4[%c0_21, %c0_22] : memref<2x32xf32, #tpu.memory_space<vmem>>, vector<2x32xf32>
      %cst_23 = arith.constant dense<0.000000e+00> : vector<2x2xf32>
      %29 = tpu.matmul %26, %27, %cst_23 {dimension_numbers = #tpu.dot_dimension_numbers<[1], [0], [0], [1], [0, 0, 1, 1], [], []>} : vector<2x32xf32>, vector<32x2xf32>, vector<2x2xf32> -> vector<2x2xf32>
      %cst_24 = arith.constant 0.000000e+00 : f32
      %30 = vector.broadcast %cst_24 : f32 to vector<2x2xf32>
      %31 = arith.maximumf %29, %30 : vector<2x2xf32>
      %cst_25 = arith.constant dense<0.000000e+00> : vector<2x32xf32>
      %32 = tpu.matmul %31, %28, %cst_25 {dimension_numbers = #tpu.dot_dimension_numbers<[1], [0], [0], [1], [0, 0, 1, 1], [], []>} : vector<2x2xf32>, vector<2x32xf32>, vector<2x32xf32> -> vector<2x32xf32>
      %33 = vector.extract_strided_slice %32 {offsets = [0, 0], sizes = [1, 32], strides = [1, 1]} : vector<2x32xf32> to vector<1x32xf32>
      %34 = vector.extract_strided_slice %32 {offsets = [1, 0], sizes = [1, 32], strides = [1, 1]} : vector<2x32xf32> to vector<1x32xf32>
      %35 = arith.addf %33, %34 : vector<1x32xf32>
      %36 = arith.negf %35 : vector<1x32xf32>
      %37 = math.exp %36 : vector<1x32xf32>
      %cst_26 = arith.constant 1.000000e+00 : f32
      %38 = vector.broadcast %cst_26 : f32 to vector<1x32xf32>
      %39 = arith.addf %38, %37 : vector<1x32xf32>
      %40 = arith.divf %38, %39 : vector<1x32xf32>
      %c0_27 = arith.constant 0 : index
      %c0_28 = arith.constant 0 : index
      %c0_29 = arith.constant 0 : index
      %41 = vector.load %arg5[%c0_27, %c0_28, %c0_29] : memref<1x1x32xf32, #tpu.memory_space<vmem>>, vector<1x1x32xf32>
      %42 = vector.shape_cast %41 : vector<1x1x32xf32> to vector<1x32xf32>
      %43 = vector.shape_cast %40 : vector<1x32xf32> to vector<1x1x32xf32>
      tpu.vector_store %arg5[%c0_27, %c0_28, %c0_29], %43 {strides = array<i32>} : memref<1x1x32xf32, #tpu.memory_space<vmem>>, vector<1x1x32xf32>,
    } else {
    }
    return
  }
  func.func @transform_0(%arg0: i32, %arg1: i32) -> (i32, i32, i32) {
    %c0_i32 = arith.constant 0 : i32
    %c0_i32_0 = arith.constant 0 : i32
    return %arg0, %c0_i32, %arg1 : i32, i32, i32
  }
  func.func @transform_1(%arg0: i32, %arg1: i32) -> (i32, i32) {
    %c0_i32 = arith.constant 0 : i32
    %c0_i32_0 = arith.constant 0 : i32
    %c0_i32_1 = arith.constant 0 : i32
    return %c0_i32, %c0_i32_0 : i32, i32
  }
  func.func @transform_2(%arg0: i32, %arg1: i32) -> (i32, i32) {
    %c0_i32 = arith.constant 0 : i32
    %c0_i32_0 = arith.constant 0 : i32
    %c0_i32_1 = arith.constant 0 : i32
    return %c0_i32, %c0_i32_0 : i32, i32
  }
  func.func @transform_3(%arg0: i32, %arg1: i32) -> (i32, i32, i32) {
    %c0_i32 = arith.constant 0 : i32
    %c0_i32_0 = arith.constant 0 : i32
    %c0_i32_1 = arith.constant 0 : i32
    return %arg0, %c0_i32, %c0_i32_0 : i32, i32, i32
  }
}

</mosaic_0001>

<llo_original>
// kernel: tpu_custom_call.1
$region0: #{tpu_custom_call.1}
  #allocation0 [shape = 'u32[]', space=smem, size = 0x4, offset = 0x4, fixed_abs, tag = 'smem constant byte address 0x4 - core index']
  #allocation1 [shape = 'u32[144,128]{1,0:T(1,128)}', space=vmem, size = 0x12000, scoped, tag = 'internal scratch']
  #allocation2 [shape = 'f32[32,128]{1,0:T(8,128)}', space=vmem, size = 0x4000, scoped, tag = 'scratch operand']
  #allocation3 [shape = 'f32[32,128]{1,0:T(8,128)}', space=vmem, size = 0x4000, scoped, tag = 'scratch operand']
  %s0 = inlined_call_operand.hbm [shape: f32[2,32,256], index: 0, kind: input, shape index: {}]
  %s1 = inlined_call_operand.vmem [shape: f32[32,2], index: 1, kind: input, shape index: {}]
  %s2 = inlined_call_operand.vmem [shape: f32[2,32], index: 2, kind: input, shape index: {}]
  %s3 = inlined_call_operand.hbm [shape: f32[2,1,32], index: 3, kind: output, shape index: {}]
  %s4 = sld [smem:[#allocation0]]
  $region57: #{tpu_custom_call.1} parent=0
    _
  %s6 = ssub.s32 1, %s4
  %s7 = scalar_select 0, %s6, %s4
  $region1: #{tpu_custom_call.1} parent=0
    #allocation4 [shape = 'u8[32768]{0}', space=vmem, size = 0x8000, scoped, tag = 'input window, operand 0']
    #allocation5 [shape = 's32[2]{0}', space=sflag, size = 0x8, scoped, tag = 'scoped memory for tpu_custom_call.1']
    #allocation6 [shape = 's32[2]{0}', space=sflag, size = 0x8, scoped, tag = 'scoped memory for tpu_custom_call.1']
    #allocation7 [shape = 'u8[1024]{0}', space=vmem, size = 0x400, scoped, tag = 'output window, operand 0']
    %8 = vsyncpa [#allocation5], 0
    %s9 = scalar_lea.sflag [#allocation5], 1
    %10 = vsyncpa %s9, 0
    %11 = vsyncpa [#allocation6], 0
    %s12 = scalar_lea.sflag [#allocation6], 1
    %13 = vsyncpa %s12, 0
    loop: start=0, step=1, limit=6
    $region2: #{tpu_custom_call.1} parent=1 // loop_pre_header
      _
    $region3: #{tpu_custom_call.1} parent=1 // loop_header
      %s15 = sphi 0, %s19
      %p16 = scmp.ge.s32.totalorder %s15, 6
      %s22 = sphi 0, %s34
      %s23 = sphi 0, %s30
      %s24 = sphi 0, %s22
      %s25 = sphi 0, %s23
      %s26 = sphi 0, %s24
      %s27 = sphi 0, %s25
      %s39 = sphi 0, %s41
      %s42 = sphi 0, %s39
      %s43 = sphi 0, %s42
      %s59 = sphi 0, %s43
      %s63 = sphi 0, %s63
      %s65 = sphi 0, %s63
      %s66 = sphi 0, %s65
      %s80 = sphi 0, %s66
      %s84 = sphi 0, %s84
      %s86 = sphi 0, %s84
      %s87 = sphi 0, %s86
      %s101 = sphi 0, %s87
      %s107 = sphi 0, %s109
      %s110 = sphi 0, %s107
      %s111 = sphi 0, %s110
      %s127 = sphi 0, %s111
    $region4: #{tpu_custom_call.1} parent=1 // loop_header_branch
      %18 = sbr.rel (%p16) target = $region8
    $region5: #{tpu_custom_call.1} parent=1 // loop_body
      %s20 = ssub.s32 %s15, 1
      %s21 = ssub.s32 %s15, 2
      %s28 = sadd.s32 1, %s23
      %p29 = scmp.ge.s32.totalorder %s28, 2
      %s30 = scalar_select %p29, 0, %s28
      %s31 = sadd.s32 1, %s22
      %s32 = scalar_select %p29, %s31, %s22
      %p33 = scmp.ge.s32.totalorder %s32, 2
      %s34 = scalar_select %p33, 0, %s32
      %s35 = ssub.s32 %s22, %s34
      %s36 = ssub.s32 %s23, %s30
      %s37 = sor.u32 %s35, %s36
      %p38 = scmp.eq.s32.totalorder %s37, 0
      %s40 = sadd.s32 %s39, 1
      %s41 = scalar_select %p38, %s39, %s40
      %p44 = pneg %p38
      %p45 = scmp.eq.s32.totalorder %s15, 3
      %p46 = por %p44, %p45
      %p47 = scmp.ne.s32.totalorder %s39, %s42
      %p48 = scmp.eq.s32.totalorder %s15, 0
      %p49 = por %p47, %p48
      %p50 = scmp.ne.s32.totalorder %s39, %s42
      %p51 = scmp.eq.s32.totalorder %s20, 3
      %p52 = por %p50, %p51
      %p53 = scmp.ne.s32.totalorder %s42, %s43
      %p54 = scmp.eq.s32.totalorder %s20, 0
      %p55 = por %p53, %p54
      %p56 = scmp.ne.s32.totalorder %s42, %s43
      %p57 = scmp.eq.s32.totalorder %s21, 3
      %p58 = por %p56, %p57
      %p60 = scmp.ne.s32.totalorder %s43, %s59
      %p61 = scmp.eq.s32.totalorder %s21, 0
      %p62 = por %p60, %p61
      %s64 = sadd.s32 %s63, 1
      %p67 = scmp.eq.s32.totalorder %s15, 3
      %p68 = scmp.ne.s32.totalorder %s63, %s65
      %p69 = scmp.eq.s32.totalorder %s15, 0
      %p70 = por %p68, %p69
      %p71 = scmp.ne.s32.totalorder %s63, %s65
      %p72 = scmp.eq.s32.totalorder %s20, 3
      %p73 = por %p71, %p72
      %p74 = scmp.ne.s32.totalorder %s65, %s66
      %p75 = scmp.eq.s32.totalorder %s20, 0
      %p76 = por %p74, %p75
      %p77 = scmp.ne.s32.totalorder %s65, %s66
      %p78 = scmp.eq.s32.totalorder %s21, 3
      %p79 = por %p77, %p78
      %p81 = scmp.ne.s32.totalorder %s66, %s80
      %p82 = scmp.eq.s32.totalorder %s21, 0
      %p83 = por %p81, %p82
      %s85 = sadd.s32 %s84, 1
      %p88 = scmp.eq.s32.totalorder %s15, 3
      %p89 = scmp.ne.s32.totalorder %s84, %s86
      %p90 = scmp.eq.s32.totalorder %s15, 0
      %p91 = por %p89, %p90
      %p92 = scmp.ne.s32.totalorder %s84, %s86
      %p93 = scmp.eq.s32.totalorder %s20, 3
      %p94 = por %p92, %p93
      %p95 = scmp.ne.s32.totalorder %s86, %s87
      %p96 = scmp.eq.s32.totalorder %s20, 0
      %p97 = por %p95, %p96
      %p98 = scmp.ne.s32.totalorder %s86, %s87
      %p99 = scmp.eq.s32.totalorder %s21, 3
      %p100 = por %p98, %p99
      %p102 = scmp.ne.s32.totalorder %s87, %s101
      %p103 = scmp.eq.s32.totalorder %s21, 0
      %p104 = por %p102, %p103
      %s105 = ssub.s32 %s22, %s34
      %p106 = scmp.eq.s32.totalorder %s105, 0
      %s108 = sadd.s32 %s107, 1
      %s109 = scalar_select %p106, %s107, %s108
      %p112 = pneg %p106
      %p113 = scmp.eq.s32.totalorder %s15, 3
      %p114 = por %p112, %p113
      %p115 = scmp.ne.s32.totalorder %s107, %s110
      %p116 = scmp.eq.s32.totalorder %s15, 0
      %p117 = por %p115, %p116
      %p118 = scmp.ne.s32.totalorder %s107, %s110
      %p119 = scmp.eq.s32.totalorder %s20, 3
      %p120 = por %p118, %p119
      %p121 = scmp.ne.s32.totalorder %s110, %s111
      %p122 = scmp.eq.s32.totalorder %s20, 0
      %p123 = por %p121, %p122
      %p124 = scmp.ne.s32.totalorder %s110, %s111
      %p125 = scmp.eq.s32.totalorder %s21, 3
      %p126 = por %p124, %p125
      %p128 = scmp.ne.s32.totalorder %s111, %s127
      %p129 = scmp.eq.s32.totalorder %s21, 0
      %p130 = por %p128, %p129
      %p131 = scmp.le.s32.totalorder 1, %s15
      %p132 = scmp.lt.s32.totalorder %s15, 5
      %p133 = pnand %p131, %p132
      %p134 = pneg %p133
      // Predicated region
      $region9: #{tpu_custom_call.1} parent=5 // pred_check
        _
      $region10: #{tpu_custom_call.1} parent=5 // pred_check_branch
        %136 = sbr.rel (%p133) target = $region12
      $region11: #{tpu_custom_call.1} parent=5 // pred_region
        %s137 = ssub.s32 %s15, 1
        // Predicated region
        $region13: #{tpu_custom_call.1} parent=11 // pred_check
          %p138 = pneg %p76
        $region14: #{tpu_custom_call.1} parent=11 // pred_check_branch
          %140 = sbr.rel (%p138) target = $region16
        $region15: #{tpu_custom_call.1} parent=11 // pred_region
          _
        $region16: #{tpu_custom_call.1} parent=11 // pred_fallthru
          _
        // Predicated region
        $region17: #{tpu_custom_call.1} parent=11 // pred_check
          %p141 = pneg %p97
        $region18: #{tpu_custom_call.1} parent=11 // pred_check_branch
          %143 = sbr.rel (%p141) target = $region20
        $region19: #{tpu_custom_call.1} parent=11 // pred_region
          _
        $region20: #{tpu_custom_call.1} parent=11 // pred_fallthru
          _
      $region12: #{tpu_custom_call.1} parent=5 // pred_fallthru
        _
      %p144 = scmp.lt.s32.totalorder %s15, 4
      // Predicated region
      $region21: #{tpu_custom_call.1} parent=5 // pred_check
        %p145 = pneg %p144
      $region22: #{tpu_custom_call.1} parent=5 // pred_check_branch
        %147 = sbr.rel (%p145) target = $region24
      $region23: #{tpu_custom_call.1} parent=5 // pred_region
        // Predicated region
        $region25: #{tpu_custom_call.1} parent=23 // pred_check
          %p148 = pneg %p49
        $region26: #{tpu_custom_call.1} parent=23 // pred_check_branch
          %150 = sbr.rel (%p148) target = $region28
        $region27: #{tpu_custom_call.1} parent=23 // pred_region
          %s151 = sand.u32 %s39, 1
          %s152 = scalar_lea.sflag [#allocation5], %s151
          %s153 = sand.u32 %s39, 1
          %s154 = smul.addr %s153, 32
          %s155 = scalar_lea.vmem [#allocation4], %s154
          %s157 = ssub.s32 512, 512
          %158 = vsyncadd %s152, %s157
          %s159 = smul.addr %s22, 8
          %s160 = sadd.s32 %s23, %s159
          %s161 = smul.addr %s160, 128
          %s162 = scalar_lea.hbm %s0, %s161
          %s163 = sshll.u32 %s155, 4
          %s164 = int_to_ptr.vmem [resolvable:$true] %s163
          %169 = dma.hbm_to_vmem [thread:$0]  %s162, 512, %s164, %s152, 256, 128, 8
        $region28: #{tpu_custom_call.1} parent=23 // pred_fallthru
          _
      $region24: #{tpu_custom_call.1} parent=5 // pred_fallthru
        _
      %p170 = scmp.le.s32.totalorder 1, %s15
      %p171 = scmp.lt.s32.totalorder %s15, 5
      %p172 = pnand %p170, %p171
      %p173 = pneg %p172
      // Predicated region
      $region29: #{tpu_custom_call.1} parent=5 // pred_check
        _
      $region30: #{tpu_custom_call.1} parent=5 // pred_check_branch
        %175 = sbr.rel (%p172) target = $region32
      $region31: #{tpu_custom_call.1} parent=5 // pred_region
        %s176 = ssub.s32 %s15, 1
        %s177 = sand.u32 %s42, 1
        %s178 = scalar_lea.sflag [#allocation5], %s177
        %s179 = sand.u32 %s42, 1
        %s180 = smul.addr %s179, 32
        %s181 = scalar_lea.vmem [#allocation4], %s180
        // Predicated region
        $region33: #{tpu_custom_call.1} parent=31 // pred_check
          %p182 = pneg %p55
        $region34: #{tpu_custom_call.1} parent=31 // pred_check_branch
          %184 = sbr.rel (%p182) target = $region36
        $region35: #{tpu_custom_call.1} parent=31 // pred_region
          %185 = dma.done %s178, 512
        $region36: #{tpu_custom_call.1} parent=31 // pred_fallthru
          _
        %s186 = sand.u32 %s42, 1
        %s187 = scalar_lea.sflag [#allocation5], %s186
        %s188 = sand.u32 %s42, 1
        %s189 = smul.addr %s188, 32
        %s190 = scalar_lea.vmem [#allocation4], %s189
        %p191 = pneg %p55
        %p192 = pneg %p52
        %p193 = pneg %p76
        %p194 = pneg %p73
        %p195 = pneg %p97
        %p196 = pneg %p94
        %p197 = pneg %p123
        %p198 = pneg %p120
        %s199 = sand.u32 %s110, 1
        %s200 = scalar_lea.sflag [#allocation6], %s199
        %s201 = sand.u32 %s110, 1
        %s202 = scalar_lea.vmem [#allocation7], %s201
        %p203 = scmp.eq.s32.totalorder %s25, 0
        // Predicated region
        $region37: #{tpu_custom_call.1} parent=31 // pred_check
          %p204 = pneg %p203
        $region38: #{tpu_custom_call.1} parent=31 // pred_check_branch
          %206 = sbr.rel (%p204) target = $region40
        $region39: #{tpu_custom_call.1} parent=31 // pred_region
          %207 = vst [vmem:[#allocation2] sm:$0xff] 0.0
          %208 = vst [vmem:[#allocation2 + $0x8] sm:$0xff] 0.0
          %209 = vst [vmem:[#allocation2 + $0x10] sm:$0xff] 0.0
          %210 = vst [vmem:[#allocation2 + $0x18] sm:$0xff] 0.0
          %211 = vst [vmem:[#allocation3] sm:$0xff] -inf
          %212 = vst [vmem:[#allocation3 + $0x8] sm:$0xff] -inf
          %213 = vst [vmem:[#allocation3 + $0x10] sm:$0xff] -inf
          %214 = vst [vmem:[#allocation3 + $0x18] sm:$0xff] -inf
        $region40: #{tpu_custom_call.1} parent=31 // pred_fallthru
          _
        %v215 = vld [vmem:[#allocation2] sm:$0xff]
        %v216 = vld [vmem:[#allocation2 + $0x8] sm:$0xff]
        %v217 = vld [vmem:[#allocation2 + $0x10] sm:$0xff]
        %v218 = vld [vmem:[#allocation2 + $0x18] sm:$0xff]
        %v219 = vld [vmem:[#allocation3] sm:$0xff]
        %v220 = vld [vmem:[#allocation3 + $0x8] sm:$0xff]
        %v221 = vld [vmem:[#allocation3 + $0x10] sm:$0xff]
        %v222 = vld [vmem:[#allocation3 + $0x18] sm:$0xff]
        %v223 = vld [vmem:[%s181] sm:$0xff]
        %v224 = vld [vmem:[%s181 + $0x8] sm:$0xff]
        %v225 = vld [vmem:[%s181 + $0x10] sm:$0xff]
        %v226 = vld [vmem:[%s181 + $0x18] sm:$0xff]
        %v227 = vadd.f32 %v215, %v223
        %v228 = vadd.f32 %v216, %v224
        %v229 = vadd.f32 %v217, %v225
        %v230 = vadd.f32 %v218, %v226
        %v231 = vmax.f32 %v219, %v223
        %v232 = vmax.f32 %v220, %v224
        %v233 = vmax.f32 %v221, %v225
        %v234 = vmax.f32 %v222, %v226
        %235 = vst [vmem:[#allocation2] sm:$0xff] %v227
        %236 = vst [vmem:[#allocation2 + $0x8] sm:$0xff] %v228
        %237 = vst [vmem:[#allocation2 + $0x10] sm:$0xff] %v229
        %238 = vst [vmem:[#allocation2 + $0x18] sm:$0xff] %v230
        %239 = vst [vmem:[#allocation3] sm:$0xff] %v231
        %240 = vst [vmem:[#allocation3 + $0x8] sm:$0xff] %v232
        %241 = vst [vmem:[#allocation3 + $0x10] sm:$0xff] %v233
        %242 = vst [vmem:[#allocation3 + $0x18] sm:$0xff] %v234
        %p243 = scmp.eq.s32.totalorder %s25, 1
        // Predicated region
        $region41: #{tpu_custom_call.1} parent=31 // pred_check
          %p244 = pneg %p243
        $region42: #{tpu_custom_call.1} parent=31 // pred_check_branch
          %246 = sbr.rel (%p244) target = $region44
        $region43: #{tpu_custom_call.1} parent=31 // pred_region
          %v247 = vld [vmem:[#allocation2] sm:$0xff]
          %v248 = vld [vmem:[#allocation2 + $0x8] sm:$0xff]
          %v249 = vld [vmem:[#allocation2 + $0x10] sm:$0xff]
          %v250 = vld [vmem:[#allocation2 + $0x18] sm:$0xff]
          %251 = vadd.xlane.f32.xlu0 %v247
          %v252 = vpop.xlane.xlu0 %251
          %253 = vadd.xlane.f32.xlu0 %v248
          %v254 = vpop.xlane.xlu0 %253
          %255 = vadd.xlane.f32.xlu0 %v249
          %v256 = vpop.xlane.xlu0 %255
          %257 = vadd.xlane.f32.xlu0 %v250
          %v258 = vpop.xlane.xlu0 %257
          %v259 = vmul.f32 %v252, 0.00390625
          %v260 = vmul.f32 %v254, 0.00390625
          %v261 = vmul.f32 %v256, 0.00390625
          %v262 = vmul.f32 %v258, 0.00390625
          %v263 = vld [vmem:[#allocation3] sm:$0xff]
          %v264 = vld [vmem:[#allocation3 + $0x8] sm:$0xff]
          %v265 = vld [vmem:[#allocation3 + $0x10] sm:$0xff]
          %v266 = vld [vmem:[#allocation3 + $0x18] sm:$0xff]
          %267 = vmax.xlane.f32.xlu0 %v263
          %v268 = vpop.xlane.xlu0 %267
          %269 = vmax.xlane.f32.xlu0 %v264
          %v270 = vpop.xlane.xlu0 %269
          %271 = vmax.xlane.f32.xlu0 %v265
          %v272 = vpop.xlane.xlu0 %271
          %273 = vmax.xlane.f32.xlu0 %v266
          %v274 = vpop.xlane.xlu0 %273
          %vm275 = vcmask 7168
          %v276 = vsel %vm275, %v259, %v268
          %v277 = vsel %vm275, %v260, %v270
          %v278 = vsel %vm275, %v261, %v272
          %v279 = vsel %vm275, %v262, %v274
          %280 = vxpose.xlu0.b32.start [1/16] %v276, 128
          %281 = vxpose.xlu0.b32.cont [2/16] %v277, 128
          %282 = vxpose.xlu0.b32.cont [3/16] %v278, 128
          %283 = vxpose.xlu0.b32.cont [4/16] %v279, 128
          %284 = vxpose.xlu0.b32.cont [5/16] 0.0, 128
          %285 = vxpose.xlu0.b32.cont [6/16] 0.0, 128
          %286 = vxpose.xlu0.b32.cont [7/16] 0.0, 128
          %287 = vxpose.xlu0.b32.cont [8/16] 0.0, 128
          %288 = vxpose.xlu0.b32.cont [9/16] 0.0, 128
          %289 = vxpose.xlu0.b32.cont [10/16] 0.0, 128
          %290 = vxpose.xlu0.b32.cont [11/16] 0.0, 128
          %291 = vxpose.xlu0.b32.cont [12/16] 0.0, 128
          %292 = vxpose.xlu0.b32.cont [13/16] 0.0, 128
          %293 = vxpose.xlu0.b32.cont [14/16] 0.0, 128
          %294 = vxpose.xlu0.b32.cont [15/16] 0.0, 128
          %295 = vxpose.xlu0.b32.end [16/16] 0.0, 128
          %v296 = vpop.trf.xlu0
          %v297 = vpop.trf.xlu0
          %v298 = vpop.trf.xlu0
          %v299 = vpop.trf.xlu0
          %v300 = vpop.trf.xlu0
          %v301 = vpop.trf.xlu0
          %v302 = vpop.trf.xlu0
          %v303 = vpop.trf.xlu0
          %v304 = vpop.trf.xlu0
          %v305 = vpop.trf.xlu0
          %v306 = vpop.trf.xlu0
          %v307 = vpop.trf.xlu0
          %v308 = vpop.trf.xlu0
          %v309 = vpop.trf.xlu0
          %v310 = vpop.trf.xlu0
          %v311 = vpop.trf.xlu0
          %v312 = vld [vmem:[%s1] sm:$0xff]
          %v313 = vld [vmem:[%s1 + $0x8] sm:$0xff]
          %v314 = vld [vmem:[%s1 + $0x10] sm:$0xff]
          %v315 = vld [vmem:[%s1 + $0x18] sm:$0xff]
          %v316 = vld [vmem:[%s2] sm:$0x3]
          %vm317 = vcmask 261120
          %v319 = vsel %vm317, %v296, 0
          %321 = vmatprep.subr.mxu0 0.0
          %322 = vmatpush1.msra.mxu0 %v312
          %323 = vmatprep.subr.mxu0 0.0
          %324 = vmatpush1.msra.mxu0 %v313
          %325 = vmatprep.subr.mxu0 0.0
          %326 = vmatpush1.msra.mxu0 %v314
          %327 = vmatprep.subr.mxu0 0.0
          %328 = vmatpush1.msra.mxu0 %v315
          %329 = vmatprep.subr.mxu0 0.0
          %330 = vmatpush1.msra.mxu0 0.0
          %331 = vmatprep.subr.mxu0 0.0
          %332 = vmatpush1.msra.mxu0 0.0
          %333 = vmatprep.subr.mxu0 0.0
          %334 = vmatpush1.msra.mxu0 0.0
          %335 = vmatprep.subr.mxu0 0.0
          %336 = vmatpush1.msra.mxu0 0.0
          %337 = vmatprep.subr.mxu0 0.0
          %338 = vmatpush1.msra.mxu0 0.0
          %339 = vmatprep.subr.mxu0 0.0
          %340 = vmatpush1.msra.mxu0 0.0
          %341 = vmatprep.subr.mxu0 0.0
          %342 = vmatpush1.msra.mxu0 0.0
          %343 = vmatprep.subr.mxu0 0.0
          %344 = vmatpush1.msra.mxu0 0.0
          %345 = vmatprep.subr.mxu0 0.0
          %346 = vmatpush1.msra.mxu0 0.0
          %347 = vmatprep.subr.mxu0 0.0
          %348 = vmatpush1.msra.mxu0 0.0
          %349 = vmatprep.subr.mxu0 0.0
          %350 = vmatpush1.msra.mxu0 0.0
          %351 = vmatprep.subr.mxu0 0.0
          %352 = vmatpush1.msra.mxu0 0.0
          %353 = vmatprep.subr.mxu0 0.0
          %354 = vmatpush1.msra.mxu0 0.0
          %355 = vmatprep.subr.mxu0 0.0
          %356 = vmatpush1.msra.mxu0 0.0
          %357 = vmatprep.subr.mxu0 0.0
          %358 = vmatpush1.msra.mxu0 0.0
          %359 = vmatprep.subr.mxu0 0.0
          %360 = vmatpush1.msra.mxu0 0.0
          %361 = vmatprep.subr.mxu0 0.0
          %362 = vmatpush1.msra.mxu0 0.0
          %363 = vmatprep.subr.mxu0 0.0
          %364 = vmatpush1.msra.mxu0 0.0
          %365 = vmatprep.subr.mxu0 0.0
          %366 = vmatpush1.msra.mxu0 0.0
          %367 = vmatprep.subr.mxu0 0.0
          %368 = vmatpush1.msra.mxu0 0.0
          %369 = vmatprep.subr.mxu0 0.0
          %370 = vmatpush1.msra.mxu0 0.0
          %371 = vmatprep.subr.mxu0 0.0
          %372 = vmatpush1.msra.mxu0 0.0
          %373 = vmatprep.subr.mxu0 0.0
          %374 = vmatpush1.msra.mxu0 0.0
          %375 = vmatprep.subr.mxu0 0.0
          %376 = vmatpush1.msra.mxu0 0.0
          %377 = vmatprep.subr.mxu0 0.0
          %378 = vmatpush1.msra.mxu0 0.0
          %379 = vmatprep.subr.mxu0 0.0
          %380 = vmatpush1.msra.mxu0 0.0
          %381 = vmatprep.subr.mxu0 0.0
          %382 = vmatpush1.msra.mxu0 0.0
          %383 = vmatprep.subr.mxu0 0.0
          %384 = vmatpush1.msra.mxu0 0.0
          %385 = vmatprep.mubr.f32.mxu0 0.0
          %386 = vmatmul.mubr.f32.gmra.mrb[0].mxu0 %v319
          %v387 = vpop.f32.mrb[0].mxu0
          %v388 = vadd.f32 0.0, %v387
          %v389 = vpop.f32.mrb[0].mxu0
          %390 = vdwg.mxu0
          %v391 = vmax.f32 %v388, 0.0
          %vm392 = vcmask 15360
          %v394 = vsel %vm392, %v391, 0
          %vm396 = vcmask 1041408
          %v398 = vsel %vm396, %v316, 0
          %400 = vmatprep.subr.mxu0 0.0
          %401 = vmatpush1.msra.mxu0 %v398
          %402 = vmatprep.subr.mxu0 0.0
          %403 = vmatpush1.msra.mxu0 0.0
          %404 = vmatprep.subr.mxu0 0.0
          %405 = vmatpush1.msra.mxu0 0.0
          %406 = vmatprep.subr.mxu0 0.0
          %407 = vmatpush1.msra.mxu0 0.0
          %408 = vmatprep.subr.mxu0 0.0
          %409 = vmatpush1.msra.mxu0 0.0
          %410 = vmatprep.subr.mxu0 0.0
          %411 = vmatpush1.msra.mxu0 0.0
          %412 = vmatprep.subr.mxu0 0.0
          %413 = vmatpush1.msra.mxu0 0.0
          %414 = vmatprep.subr.mxu0 0.0
          %415 = vmatpush1.msra.mxu0 0.0
          %416 = vmatprep.subr.mxu0 0.0
          %417 = vmatpush1.msra.mxu0 0.0
          %418 = vmatprep.subr.mxu0 0.0
          %419 = vmatpush1.msra.mxu0 0.0
          %420 = vmatprep.subr.mxu0 0.0
          %421 = vmatpush1.msra.mxu0 0.0
          %422 = vmatprep.subr.mxu0 0.0
          %423 = vmatpush1.msra.mxu0 0.0
          %424 = vmatprep.subr.mxu0 0.0
          %425 = vmatpush1.msra.mxu0 0.0
          %426 = vmatprep.subr.mxu0 0.0
          %427 = vmatpush1.msra.mxu0 0.0
          %428 = vmatprep.subr.mxu0 0.0
          %429 = vmatpush1.msra.mxu0 0.0
          %430 = vmatprep.subr.mxu0 0.0
          %431 = vmatpush1.msra.mxu0 0.0
          %432 = vmatprep.subr.mxu0 0.0
          %433 = vmatpush1.msra.mxu0 0.0
          %434 = vmatprep.subr.mxu0 0.0
          %435 = vmatpush1.msra.mxu0 0.0
          %436 = vmatprep.subr.mxu0 0.0
          %437 = vmatpush1.msra.mxu0 0.0
          %438 = vmatprep.subr.mxu0 0.0
          %439 = vmatpush1.msra.mxu0 0.0
          %440 = vmatprep.subr.mxu0 0.0
          %441 = vmatpush1.msra.mxu0 0.0
          %442 = vmatprep.subr.mxu0 0.0
          %443 = vmatpush1.msra.mxu0 0.0
          %444 = vmatprep.subr.mxu0 0.0
          %445 = vmatpush1.msra.mxu0 0.0
          %446 = vmatprep.subr.mxu0 0.0
          %447 = vmatpush1.msra.mxu0 0.0
          %448 = vmatprep.subr.mxu0 0.0
          %449 = vmatpush1.msra.mxu0 0.0
          %450 = vmatprep.subr.mxu0 0.0
          %451 = vmatpush1.msra.mxu0 0.0
          %452 = vmatprep.subr.mxu0 0.0
          %453 = vmatpush1.msra.mxu0 0.0
          %454 = vmatprep.subr.mxu0 0.0
          %455 = vmatpush1.msra.mxu0 0.0
          %456 = vmatprep.subr.mxu0 0.0
          %457 = vmatpush1.msra.mxu0 0.0
          %458 = vmatprep.subr.mxu0 0.0
          %459 = vmatpush1.msra.mxu0 0.0
          %460 = vmatprep.subr.mxu0 0.0
          %461 = vmatpush1.msra.mxu0 0.0
          %462 = vmatprep.subr.mxu0 0.0
          %463 = vmatpush1.msra.mxu0 0.0
          %464 = vmatprep.mubr.f32.mxu0 0.0
          %465 = vmatmul.mubr.f32.gmra.mrb[0].mxu0 %v394
          %v466 = vpop.f32.mrb[0].mxu0
          %v467 = vadd.f32 0.0, %v466
          %v468 = vpop.f32.mrb[0].mxu0
          %469 = vdwg.mxu0
          %v471 = vrot.slane %v467, 1
          %v473 = vadd.f32 %v467, %v471
          %v474 = vxor.u32 %v473, 2147483648
          %v475 = vmul.f32 %v474, 1.442695
          %v476 = vpow.pop %v475
          %v477 = vadd.f32 %v476, 1.0
          %v478 = vrcp.pop %v477
          %v479 = vmul.f32 1.0, %v478
          %vm480 = vcmask 253952
          %481 = vst.msk [vmem:[%s202] sm:$0x1] %vm480, %v479
        $region44: #{tpu_custom_call.1} parent=31 // pred_fallthru
          _
        %s482 = sand.u32 %s110, 1
        %s483 = scalar_lea.sflag [#allocation6], %s482
        %s484 = sand.u32 %s110, 1
        %s485 = scalar_lea.vmem [#allocation7], %s484
        // Predicated region
        $region45: #{tpu_custom_call.1} parent=31 // pred_check
          %p486 = pneg %p120
        $region46: #{tpu_custom_call.1} parent=31 // pred_check_branch
          %488 = sbr.rel (%p486) target = $region48
        $region47: #{tpu_custom_call.1} parent=31 // pred_region
          %s490 = ssub.s32 16, 16
          %491 = vsyncadd %s483, %s490
          %s492 = smul.addr %s24, 16
          %s493 = scalar_lea.hbm %s3, %s492
          %s495 = sshll.u32 %s485, 4
          %s496 = int_to_ptr.vmem [resolvable:$true] %s495
          %498 = dma.vmem_to_hbm [thread:$0]  %s496, 16, %s493, %s483
        $region48: #{tpu_custom_call.1} parent=31 // pred_fallthru
          _
      $region32: #{tpu_custom_call.1} parent=5 // pred_fallthru
        _
      %p499 = scmp.le.s32.totalorder 2, %s15
      // Predicated region
      $region49: #{tpu_custom_call.1} parent=5 // pred_check
        %p500 = pneg %p499
      $region50: #{tpu_custom_call.1} parent=5 // pred_check_branch
        %502 = sbr.rel (%p500) target = $region52
      $region51: #{tpu_custom_call.1} parent=5 // pred_region
        %s503 = ssub.s32 %s15, 2
        // Predicated region
        $region53: #{tpu_custom_call.1} parent=51 // pred_check
          %p504 = pneg %p126
        $region54: #{tpu_custom_call.1} parent=51 // pred_check_branch
          %506 = sbr.rel (%p504) target = $region56
        $region55: #{tpu_custom_call.1} parent=51 // pred_region
          %s507 = sand.u32 %s111, 1
          %s508 = scalar_lea.sflag [#allocation6], %s507
          %s509 = sand.u32 %s111, 1
          %s510 = scalar_lea.vmem [#allocation7], %s509
          %511 = dma.done %s508, 16
        $region56: #{tpu_custom_call.1} parent=51 // pred_fallthru
          _
      $region52: #{tpu_custom_call.1} parent=5 // pred_fallthru
        _
    $region6: #{tpu_custom_call.1} parent=1 // loop_footer
      %s19 = sadd.s32 1, %s15
    $region7: #{tpu_custom_call.1} parent=1 // loop_footer_branch
      %14 = sbr.rel target = $region3
    $region8: #{tpu_custom_call.1} parent=1 // loop_exit
      _
    %512 = vsyncpa [#allocation5], 1
    %s513 = scalar_lea.sflag [#allocation5], 1
    %514 = vsyncpa %s513, 1
    %515 = vsyncpa [#allocation6], 1
    %s516 = scalar_lea.sflag [#allocation6], 1
    %517 = vsyncpa %s516, 1

</llo_original>
